<compile_context>
chip_gen: v6e
topology: v6e:2x2x1
jax: 0.10.0
libtpu: 0.0.40
codegen_flags: <defaults>
</compile_context>

<pallas_src>
import jax
import jax.numpy as jnp
from jax.experimental import pallas as pl
from jax.experimental.pallas import tpu as pltpu


# ---------------------------------------------------------------------------
# Pallas kernel: per-row-tile MLP (Linear->ReLU->Linear) + L2 normalization.
# Weight/bias blocks are selected per grid step via the scalar-prefetched
# level-id array (lvl_ref lives in SMEM; it is consumed by the index_maps).
# ---------------------------------------------------------------------------
def _fused_mlp_l2norm_kernel(lvl_ref, x_ref, w1_ref, b1_ref, w2_ref, b2_ref,
                             o_ref):
    del lvl_ref  # only used by the index_maps
    x = x_ref[...]                              # (tm, Cpad), operand dtype
    w1 = w1_ref[0]                              # (Cpad, NCpad)
    w2 = w2_ref[0]                              # (NCpad, NCpad)
    b1 = b1_ref[0].astype(jnp.float32)          # (1, NCpad)
    b2 = b2_ref[0].astype(jnp.float32)

    # Linear 1 + ReLU (accumulate in f32 on the MXU, keep operands native).
    h = jnp.dot(x, w1, preferred_element_type=jnp.float32) + b1
    h = jnp.maximum(h, 0.0)
    # Linear 2.  NOTE: when operands are bf16 the post-ReLU intermediate is
    # downcast to bf16 here (slight divergence from the f32 PyTorch ref);
    # with f32 operands (default) this cast is a no-op.
    y = jnp.dot(h.astype(x.dtype), w2, preferred_element_type=jnp.float32) + b2

    # L2 normalize over the feature dim: y / (||y||_2 + 1e-7).
    # Padded columns are exactly zero, so the norm equals the unpadded norm.
    denom = jnp.sqrt(jnp.sum(y * y, axis=-1, keepdims=True)) + 1e-7
    inv = pl.reciprocal(denom, approx=True)        # EUP path, frees VALU
    inv = inv * (2.0 - denom * inv)                # one Newton step: ~exact
    o_ref[...] = (y * inv).astype(o_ref.dtype)


# ---------------------------------------------------------------------------
# Helpers
# ---------------------------------------------------------------------------
def _round_up(x, m):
    return (x + m - 1) // m * m


def _vmem_estimate(tm, cpad, ncpad, itemsize):
    # Double-buffered x/out tiles + double-buffered per-level weight blocks.
    io_bytes = 2 * tm * (cpad + ncpad) * itemsize
    w_bytes = 2 * (cpad * ncpad + ncpad * ncpad + 2 * ncpad) * itemsize
    return io_bytes + w_bytes


def _vmem_caps():
    """Generation-aware (budget, vmem_limit ceiling), never above physical
    VMEM: v7x has 64 MiB per TensorCore, v5e/v6e have 128 MiB."""
    phys = None
    try:
        phys = getattr(pltpu.get_tpu_info(), "vmem_capacity_bytes", None)
    except Exception:
        phys = None
    if phys is None:
        phys = 64 * 1024 * 1024                       # conservative fallback
    if phys <= 64 * 1024 * 1024:                      # v7x-class
        return 24 * 1024 * 1024, 48 * 1024 * 1024
    return 56 * 1024 * 1024, 100 * 1024 * 1024        # v5e / v6e


def _choose_tm(level_rows, cpad, ncpad, itemsize, cap=1024,
               vmem_budget=24 * 1024 * 1024):
    """Row tile: multiple of 8, <= cap, bounded by the smallest level in the
    bucket (so per-level zero-padding waste stays < one tile) and by the VMEM
    budget; split once more if the whole grid would be a single tile so both
    v7x TensorCores get work on the parallel axis."""
    min_rows = min(level_rows)
    tm = max(8, min(cap, _round_up(min_rows, 8)))
    while tm > 8 and _vmem_estimate(tm, cpad, ncpad, itemsize) > vmem_budget:
        tm = max(8, _round_up(tm // 2, 8))
    total_tiles = sum(_round_up(m, tm) // tm for m in level_rows)
    if total_tiles < 2 and tm > 8:
        tm = max(8, _round_up((tm + 1) // 2, 8))
    return tm


def fused_mlp_l2norm(x, level_ids, w1s, b1s, w2s, b2s, tm, vmem_limit):
    """y = l2norm(relu(x @ W1[lvl] + b1[lvl]) @ W2[lvl] + b2[lvl]) for every
    row tile, with the level selected per tile via scalar prefetch."""
    m_total, cpad = x.shape
    ncpad = w1s.shape[-1]
    num_tiles = m_total // tm

    return pl.pallas_call(
        _fused_mlp_l2norm_kernel,
        out_shape=jax.ShapeDtypeStruct((m_total, ncpad), x.dtype),
        grid_spec=pltpu.PrefetchScalarGridSpec(
            num_scalar_prefetch=1,
            grid=(num_tiles,),
            in_specs=[
                pl.BlockSpec((tm, cpad), lambda i, lvl: (i, 0)),                # x rows
                pl.BlockSpec((1, cpad, ncpad), lambda i, lvl: (lvl[i], 0, 0)),  # W1^T
                pl.BlockSpec((1, 1, ncpad), lambda i, lvl: (lvl[i], 0, 0)),     # b1
                pl.BlockSpec((1, ncpad, ncpad), lambda i, lvl: (lvl[i], 0, 0)), # W2^T
                pl.BlockSpec((1, 1, ncpad), lambda i, lvl: (lvl[i], 0, 0)),     # b2
            ],
            out_specs=pl.BlockSpec((tm, ncpad), lambda i, lvl: (i, 0)),
        ),
        compiler_params=pltpu.CompilerParams(
            dimension_semantics=("parallel",),   # independent row tiles
            vmem_limit_bytes=vmem_limit,
        ),
    )(level_ids, x, w1s, b1s, w2s, b2s)


# ---------------------------------------------------------------------------
# Parameter construction (matches PyTorch init: W ~ N(0, init_gain), b = 0)
# ---------------------------------------------------------------------------
def init_params(key, input_ncs, nc, init_gain=0.02, dtype=jnp.float32):
    """Returns PyTorch-shaped params per level: (W1 (nc,cin), b1 (nc,),
    W2 (nc,nc), b2 (nc,))."""
    params = []
    for cin in input_ncs:
        key, k1, k2 = jax.random.split(key, 3)
        w1 = jax.random.normal(k1, (nc, cin), dtype) * init_gain
        w2 = jax.random.normal(k2, (nc, nc), dtype) * init_gain
        b1 = jnp.zeros((nc,), dtype)
        b2 = jnp.zeros((nc,), dtype)
        params.append((w1, b1, w2, b2))
    return params


def pack_params(params, cpad, ncpad, dtype):
    """Pad (with exact zeros) + transpose + stack params for the fused kernel."""
    w1s, b1s, w2s, b2s = [], [], [], []
    for (w1, b1, w2, b2) in params:
        nc, cin = w1.shape
        w1p = jnp.zeros((cpad, ncpad), dtype).at[:cin, :nc].set(
            w1.T.astype(dtype))
        w2p = jnp.zeros((ncpad, ncpad), dtype).at[:nc, :nc].set(
            w2.T.astype(dtype))
        b1p = jnp.zeros((1, ncpad), dtype).at[0, :nc].set(b1.astype(dtype))
        b2p = jnp.zeros((1, ncpad), dtype).at[0, :nc].set(b2.astype(dtype))
        w1s.append(w1p); b1s.append(b1p); w2s.append(w2p); b2s.append(b2p)
    return (jnp.stack(w1s), jnp.stack(b1s), jnp.stack(w2s), jnp.stack(b2s))


# ---------------------------------------------------------------------------
# Forward pass (num_patches > 0 path of PatchLatentProjector.forward)
# ---------------------------------------------------------------------------
def patch_latent_projector_forward(feats, params, key, num_patches=64,
                                   patch_ids=None, use_bf16=False):
    if num_patches <= 0:
        # TODO(synk): num_patches == 0 branch (dim=1 norm over the spatial
        # axis + permute/reshape back to a spatial map) not implemented.
        raise NotImplementedError("num_patches == 0 path not implemented")

    nc = params[0][0].shape[0]
    out_dtype = feats[0].dtype
    compute_dtype = jnp.bfloat16 if use_bf16 else out_dtype
    itemsize = jnp.dtype(compute_dtype).itemsize

    return_ids, xs, metas = [], [], []
    for feat_id, feat in enumerate(feats):
        B, C, H, W = feat.shape
        hw = H * W
        if patch_ids is not None:
            patch_id = jnp.asarray(patch_ids[feat_id])
            if patch_id.ndim == 2:
                # TODO(synk): per-batch (2-D) patch_ids gather not implemented.
                raise NotImplementedError("2-D patch_ids path not implemented")
        else:
            key, sub = jax.random.split(key)
            patch_id = jax.random.permutation(sub, hw)[:int(min(num_patches, hw))]
        P = int(patch_id.shape[0])

        # Gather BEFORE transposing: (B, C, HW)[..., patch_id] -> (B, C, P),
        # then lay the small result out as (B*P, C).
        # TODO(synk): fold this gather into the kernel via scalar-prefetched
        # patch ids (pl.Element row gather / manual DMA) to drop the
        # take/transpose/reshape XLA chain entirely for small P.
        sel = jnp.take(feat.reshape(B, C, hw), patch_id, axis=2)
        x = jnp.transpose(sel, (0, 2, 1)).reshape(B * P, C)

        xs.append(x)
        metas.append((B, P))
        return_ids.append(patch_id)

    ncpad = _round_up(nc, 128)
    vmem_budget, vmem_cap = _vmem_caps()

    # Group levels by their padded K (round_up(cin, 128)); one pallas_call per
    # bucket so thin levels don't DMA / matmul the widest level's zero columns.
    buckets = {}
    for lvl, x in enumerate(xs):
        buckets.setdefault(_round_up(x.shape[1], 128), []).append(lvl)

    outputs = [None] * len(xs)
    for cpad, levels in sorted(buckets.items()):
        level_rows = [xs[l].shape[0] for l in levels]
        tm = _choose_tm(level_rows, cpad, ncpad, itemsize,
                        cap=1024, vmem_budget=vmem_budget)

        row_pads = [_round_up(m, tm) for m in level_rows]
        total_rows = sum(row_pads)

        # Build the padded slab in one shot (no per-level zeros + concat).
        # Padded rows are sliced off after the kernel, so their (possibly
        # nonzero, once biases are trained) values are never used.
        x_all = jnp.zeros((total_rows, cpad), compute_dtype)
        level_ids, offs = [], []
        off = 0
        for bidx, (l, m_pad) in enumerate(zip(levels, row_pads)):
            x = xs[l]
            m, c = x.shape
            x_all = x_all.at[off:off + m, :c].set(x.astype(compute_dtype))
            level_ids += [bidx] * (m_pad // tm)
            offs.append(off)
            off += m_pad
        level_ids = jnp.asarray(level_ids, jnp.int32)

        w1s, b1s, w2s, b2s = pack_params([params[l] for l in levels],
                                         cpad, ncpad, compute_dtype)

        vmem_limit = int(min(max(4 * _vmem_estimate(tm, cpad, ncpad, itemsize),
                                 8 * 1024 * 1024),
                             vmem_cap))

        y_all = fused_mlp_l2norm(x_all, level_ids, w1s, b1s, w2s, b2s, tm,
                                 vmem_limit)

        for l, o in zip(levels, offs):
            B, P = metas[l]
            outputs[l] = (y_all[o:o + B * P, :nc]
                          .astype(out_dtype).reshape(B, P, nc))

    return outputs, return_ids


# ---------------------------------------------------------------------------
# Pure-JAX reference (mirrors the PyTorch module) for correctness checking.
# ---------------------------------------------------------------------------
def _reference_forward(feats, params, patch_id_list, nc):
    outs = []
    for feat, (w1, b1, w2, b2), pid in zip(feats, params, patch_id_list):
        B, C, H, W = feat.shape
        fr = jnp.transpose(feat, (0, 2, 3, 1)).reshape(B, H * W, C)
        xs = fr[:, pid, :].reshape(-1, C)
        h = jnp.maximum(xs @ w1.T + b1, 0.0)
        y = h @ w2.T + b2
        n = jnp.linalg.norm(y, axis=-1, keepdims=True)
        y = y / (n + 1e-7)
        outs.append(y.reshape(B, -1, nc))
    return outs


def _run_case(key, input_ncs, spatials, nc, B, num_patches):
    key, pkey = jax.random.split(key)
    params = init_params(pkey, input_ncs, nc)

    feats = []
    for cin, s in zip(input_ncs, spatials):
        key, fkey = jax.random.split(key)
        feats.append(jax.random.normal(fkey, (B, cin, s, s), jnp.float32))

    key, rkey = jax.random.split(key)
    out_feats, out_ids = patch_latent_projector_forward(
        feats, params, rkey, num_patches=num_patches)

    for y in out_feats:
        jax.block_until_ready(y)

    ref_feats = _reference_forward(feats, params, out_ids, nc)
    for y, yr in zip(out_feats, ref_feats):
        assert y.shape == (B, num_patches, nc), y.shape
        norms = jnp.linalg.norm(y, axis=-1)
        assert bool(jnp.all(jnp.abs(norms - 1.0) < 5e-3)), norms
        err = jnp.max(jnp.abs(y - yr))
        assert bool(err < 5e-3), err
    return key


if __name__ == "__main__":
    key = jax.random.PRNGKey(0)

    # Case 1: small config consistent with the module (3 levels, one K bucket).
    key = _run_case(key, input_ncs=[4, 8, 16], spatials=[16, 8, 4],
                    nc=32, B=2, num_patches=8)

    # Case 2: heterogeneous channel widths -> exercises the per-K-bucket
    # (multiple pallas_call) path.
    key = _run_case(key, input_ncs=[8, 160], spatials=[8, 4],
                    nc=32, B=2, num_patches=4)

    print("KERNEL_OK")
</pallas_src>

<mosaic_0001>
module attributes {stable_mosaic.version = 11 : i64} {
  func.func @_fused_mlp_l2norm_kernel(%arg0: i32, %arg1: memref<3xi32, #tpu.memory_space<smem>>, %arg2: memref<16x128xf32, #tpu.memory_space<vmem>>, %arg3: memref<1x128x128xf32, #tpu.memory_space<vmem>>, %arg4: memref<1x1x128xf32, #tpu.memory_space<vmem>>, %arg5: memref<1x128x128xf32, #tpu.memory_space<vmem>>, %arg6: memref<1x1x128xf32, #tpu.memory_space<vmem>>, %arg7: memref<16x128xf32, #tpu.memory_space<vmem>>) attributes {dimension_semantics = [#tpu.dimension_semantics<parallel>], iteration_bounds = array<i64: 3>, scalar_prefetch = 1 : i64, scratch_operands = 0 : i64, tpu.core_type = #tpu.core_type<tc>, window_params = [{transform_indices = @transform_0, window_bounds = array<i64: 16, 128>}, {transform_indices = @transform_1, window_bounds = array<i64: 1, 128, 128>}, {transform_indices = @transform_2, window_bounds = array<i64: 1, 1, 128>}, {transform_indices = @transform_3, window_bounds = array<i64: 1, 128, 128>}, {transform_indices = @transform_4, window_bounds = array<i64: 1, 1, 128>}, {transform_indices = @transform_5, window_bounds = array<i64: 16, 128>}]} {
    %c0 = arith.constant 0 : index
    %c0_0 = arith.constant 0 : index
    %0 = vector.load %arg2[%c0, %c0_0] : memref<16x128xf32, #tpu.memory_space<vmem>>, vector<16x128xf32>
    %c0_1 = arith.constant 0 : index
    %c0_2 = arith.constant 0 : index
    %c0_3 = arith.constant 0 : index
    %1 = vector.load %arg3[%c0_1, %c0_2, %c0_3] : memref<1x128x128xf32, #tpu.memory_space<vmem>>, vector<1x128x128xf32>
    %2 = vector.shape_cast %1 : vector<1x128x128xf32> to vector<128x128xf32>
    %c0_4 = arith.constant 0 : index
    %c0_5 = arith.constant 0 : index
    %c0_6 = arith.constant 0 : index
    %3 = vector.load %arg5[%c0_4, %c0_5, %c0_6] : memref<1x128x128xf32, #tpu.memory_space<vmem>>, vector<1x128x128xf32>
    %4 = vector.shape_cast %3 : vector<1x128x128xf32> to vector<128x128xf32>
    %c0_7 = arith.constant 0 : index
    %c0_8 = arith.constant 0 : index
    %c0_9 = arith.constant 0 : index
    %5 = vector.load %arg4[%c0_7, %c0_8, %c0_9] : memref<1x1x128xf32, #tpu.memory_space<vmem>>, vector<1x1x128xf32>
    %6 = vector.shape_cast %5 : vector<1x1x128xf32> to vector<1x128xf32>
    %c0_10 = arith.constant 0 : index
    %c0_11 = arith.constant 0 : index
    %c0_12 = arith.constant 0 : index
    %7 = vector.load %arg6[%c0_10, %c0_11, %c0_12] : memref<1x1x128xf32, #tpu.memory_space<vmem>>, vector<1x1x128xf32>
    %8 = vector.shape_cast %7 : vector<1x1x128xf32> to vector<1x128xf32>
    %cst = arith.constant dense<0.000000e+00> : vector<16x128xf32>
    %9 = tpu.matmul %0, %2, %cst {dimension_numbers = #tpu.dot_dimension_numbers<[1], [0], [0], [1], [0, 0, 1, 1], [], []>} : vector<16x128xf32>, vector<128x128xf32>, vector<16x128xf32> -> vector<16x128xf32>
    %10 = vector.broadcast %6 : vector<1x128xf32> to vector<16x128xf32>
    %11 = arith.addf %9, %10 : vector<16x128xf32>
    %cst_13 = arith.constant 0.000000e+00 : f32
    %12 = vector.broadcast %cst_13 : f32 to vector<16x128xf32>
    %13 = arith.maximumf %11, %12 : vector<16x128xf32>
    %cst_14 = arith.constant dense<0.000000e+00> : vector<16x128xf32>
    %14 = tpu.matmul %13, %4, %cst_14 {dimension_numbers = #tpu.dot_dimension_numbers<[1], [0], [0], [1], [0, 0, 1, 1], [], []>} : vector<16x128xf32>, vector<128x128xf32>, vector<16x128xf32> -> vector<16x128xf32>
    %15 = vector.broadcast %8 : vector<1x128xf32> to vector<16x128xf32>
    %16 = arith.addf %14, %15 : vector<16x128xf32>
    %17 = arith.mulf %16, %16 : vector<16x128xf32>
    %cst_15 = arith.constant dense<0.000000e+00> : vector<16xf32>
    %18 = vector.multi_reduction <add>, %17, %cst_15 [1] : vector<16x128xf32> to vector<16xf32>
    %19 = vector.shape_cast %18 : vector<16xf32> to vector<16x1xf32>
    %20 = math.sqrt %19 : vector<16x1xf32>
    %cst_16 = arith.constant 1.000000e-07 : f32
    %21 = vector.broadcast %cst_16 : f32 to vector<16x1xf32>
    %22 = arith.addf %20, %21 : vector<16x1xf32>
    %23 = tpu.reciprocal %22 {approx = true} : vector<16x1xf32> -> vector<16x1xf32>
    %24 = arith.mulf %22, %23 : vector<16x1xf32>
    %cst_17 = arith.constant 2.000000e+00 : f32
    %25 = vector.broadcast %cst_17 : f32 to vector<16x1xf32>
    %26 = arith.subf %25, %24 : vector<16x1xf32>
    %27 = arith.mulf %23, %26 : vector<16x1xf32>
    %28 = vector.broadcast %27 : vector<16x1xf32> to vector<16x128xf32>
    %29 = arith.mulf %16, %28 : vector<16x128xf32>
    %c0_18 = arith.constant 0 : index
    %c0_19 = arith.constant 0 : index
    %30 = vector.load %arg7[%c0_18, %c0_19] : memref<16x128xf32, #tpu.memory_space<vmem>>, vector<16x128xf32>
    tpu.vector_store %arg7[%c0_18, %c0_19], %29 {strides = array<i32>} : memref<16x128xf32, #tpu.memory_space<vmem>>, vector<16x128xf32>,
    return
  }
  func.func @transform_0(%arg0: i32, %arg1: memref<3xi32, #tpu.memory_space<smem>>) -> (i32, i32) {
    %c0_i32 = arith.constant 0 : i32
    %c0_i32_0 = arith.constant 0 : i32
    return %arg0, %c0_i32 : i32, i32
  }
  func.func @transform_1(%arg0: i32, %arg1: memref<3xi32, #tpu.memory_space<smem>>) -> (i32, i32, i32) {
    %0 = arith.index_cast %arg0 : i32 to index
    %1 = memref.load %arg1[%0] : memref<3xi32, #tpu.memory_space<smem>>
    %c0_i32 = arith.constant 0 : i32
    %c0_i32_0 = arith.constant 0 : i32
    %c0_i32_1 = arith.constant 0 : i32
    return %1, %c0_i32, %c0_i32_0 : i32, i32, i32
  }
  func.func @transform_2(%arg0: i32, %arg1: memref<3xi32, #tpu.memory_space<smem>>) -> (i32, i32, i32) {
    %0 = arith.index_cast %arg0 : i32 to index
    %1 = memref.load %arg1[%0] : memref<3xi32, #tpu.memory_space<smem>>
    %c0_i32 = arith.constant 0 : i32
    %c0_i32_0 = arith.constant 0 : i32
    %c0_i32_1 = arith.constant 0 : i32
    return %1, %c0_i32, %c0_i32_0 : i32, i32, i32
  }
  func.func @transform_3(%arg0: i32, %arg1: memref<3xi32, #tpu.memory_space<smem>>) -> (i32, i32, i32) {
    %0 = arith.index_cast %arg0 : i32 to index
    %1 = memref.load %arg1[%0] : memref<3xi32, #tpu.memory_space<smem>>
    %c0_i32 = arith.constant 0 : i32
    %c0_i32_0 = arith.constant 0 : i32
    %c0_i32_1 = arith.constant 0 : i32
    return %1, %c0_i32, %c0_i32_0 : i32, i32, i32
  }
  func.func @transform_4(%arg0: i32, %arg1: memref<3xi32, #tpu.memory_space<smem>>) -> (i32, i32, i32) {
    %0 = arith.index_cast %arg0 : i32 to index
    %1 = memref.load %arg1[%0] : memref<3xi32, #tpu.memory_space<smem>>
    %c0_i32 = arith.constant 0 : i32
    %c0_i32_0 = arith.constant 0 : i32
    %c0_i32_1 = arith.constant 0 : i32
    return %1, %c0_i32, %c0_i32_0 : i32, i32, i32
  }
  func.func @transform_5(%arg0: i32, %arg1: memref<3xi32, #tpu.memory_space<smem>>) -> (i32, i32) {
    %c0_i32 = arith.constant 0 : i32
    %c0_i32_0 = arith.constant 0 : i32
    return %arg0, %c0_i32 : i32, i32
  }
}

</mosaic_0001>

<llo_original>
// kernel: tpu_custom_call.1
$region0: #{tpu_custom_call.1}
  #allocation0 [shape = 'u32[]', space=smem, size = 0x4, offset = 0x4, fixed_abs, tag = 'smem constant byte address 0x4 - core index']
  #allocation1 [shape = 'u32[144,128]{1,0:T(1,128)}', space=vmem, size = 0x12000, scoped, tag = 'internal scratch']
  #allocation2 [shape = 's32[1]{0}', space=sflag, size = 0x4, scoped, tag = 'scoped memory for tpu_custom_call.1']
  #allocation3 [shape = 'u8[512]{0}', space=smem, size = 0x200, scoped, tag = 'prefetched SMEM operand 0']
  %s0 = inlined_call_operand.hbm [shape: s32[3], index: 0, kind: input, shape index: {}]
  %s1 = inlined_call_operand.hbm [shape: f32[48,128], index: 1, kind: input, shape index: {}]
  %s2 = inlined_call_operand.hbm [shape: f32[3,128,128], index: 2, kind: input, shape index: {}]
  %s3 = inlined_call_operand.vmem [shape: f32[3,1,128], index: 3, kind: input, shape index: {}]
  %s4 = inlined_call_operand.hbm [shape: f32[3,128,128], index: 4, kind: input, shape index: {}]
  %s5 = inlined_call_operand.vmem [shape: f32[3,1,128], index: 5, kind: input, shape index: {}]
  %s6 = inlined_call_operand.hbm [shape: f32[48,128], index: 6, kind: output, shape index: {}]
  %s7 = sld [smem:[#allocation0]]
  $region65: #{tpu_custom_call.1} parent=0
    _
  %s9 = ssub.s32 1, %s7
  %s10 = scalar_select 0, %s9, %s7
  %12 = dma.hbm_to_smem %s0, 16, [#allocation3], [#allocation2]
  %13 = dma.done [#allocation2], 16
  %14 = sfence
  $region1: #{tpu_custom_call.1} parent=0
    #allocation4 [shape = 'u8[16384]{0}', space=vmem, size = 0x4000, scoped, tag = 'input window, operand 1']
    #allocation5 [shape = 's32[2]{0}', space=sflag, size = 0x8, scoped, tag = 'scoped memory for tpu_custom_call.1']
    #allocation6 [shape = 's32[2]{0}', space=sflag, size = 0x8, scoped, tag = 'scoped memory for tpu_custom_call.1']
    #allocation7 [shape = 'u8[131072]{0}', space=vmem, size = 0x20000, scoped, tag = 'input window, operand 2']
    #allocation8 [shape = 's32[2]{0}', space=sflag, size = 0x8, scoped, tag = 'scoped memory for tpu_custom_call.1']
    #allocation9 [shape = 'u8[131072]{0}', space=vmem, size = 0x20000, scoped, tag = 'input window, operand 4']
    #allocation10 [shape = 'u8[16384]{0}', space=vmem, size = 0x4000, scoped, tag = 'output window, operand 0']
    %15 = vsyncpa [#allocation5], 0
    %s16 = scalar_lea.sflag [#allocation5], 1
    %17 = vsyncpa %s16, 0
    %18 = vsyncpa [#allocation8], 0
    %s19 = scalar_lea.sflag [#allocation8], 1
    %20 = vsyncpa %s19, 0
    %21 = vsyncpa [#allocation6], 0
    %s22 = scalar_lea.sflag [#allocation6], 1
    %23 = vsyncpa %s22, 0
    loop: start=0, step=1, limit=5
    $region2: #{tpu_custom_call.1} parent=1 // loop_pre_header
      _
    $region3: #{tpu_custom_call.1} parent=1 // loop_header
      %s25 = sphi 0, %s29
      %p26 = scmp.ge.s32.totalorder %s25, 5
      %s35 = sphi 0, %s37
      %s38 = sphi 0, %s35
      %s39 = sphi 0, %s38
      %s55 = sphi 0, %s39
      %s63 = sphi 0, %s65
      %s66 = sphi 0, %s63
      %s67 = sphi 0, %s66
      %s83 = sphi 0, %s67
      %s91 = sphi 0, %s93
      %s94 = sphi 0, %s91
      %s95 = sphi 0, %s94
      %s111 = sphi 0, %s95
      %s119 = sphi 0, %s121
      %s122 = sphi 0, %s119
      %s123 = sphi 0, %s122
      %s139 = sphi 0, %s123
      %s147 = sphi 0, %s149
      %s150 = sphi 0, %s147
      %s151 = sphi 0, %s150
      %s167 = sphi 0, %s151
      %s173 = sphi 0, %s175
      %s176 = sphi 0, %s173
      %s177 = sphi 0, %s176
      %s193 = sphi 0, %s177
    $region4: #{tpu_custom_call.1} parent=1 // loop_header_branch
      %28 = sbr.rel (%p26) target = $region8
    $region5: #{tpu_custom_call.1} parent=1 // loop_body
      %s30 = ssub.s32 %s25, 1
      %s31 = ssub.s32 %s25, 2
      %s32 = sadd.s32 %s25, 1
      %s33 = ssub.s32 %s25, %s32
      %p34 = scmp.eq.s32.totalorder %s33, 0
      %s36 = sadd.s32 %s35, 1
      %s37 = scalar_select %p34, %s35, %s36
      %p40 = pneg %p34
      %p41 = scmp.eq.s32.totalorder %s25, 2
      %p42 = por %p40, %p41
      %p43 = scmp.ne.s32.totalorder %s35, %s38
      %p44 = scmp.eq.s32.totalorder %s25, 0
      %p45 = por %p43, %p44
      %p46 = scmp.ne.s32.totalorder %s35, %s38
      %p47 = scmp.eq.s32.totalorder %s30, 2
      %p48 = por %p46, %p47
      %p49 = scmp.ne.s32.totalorder %s38, %s39
      %p50 = scmp.eq.s32.totalorder %s30, 0
      %p51 = por %p49, %p50
      %p52 = scmp.ne.s32.totalorder %s38, %s39
      %p53 = scmp.eq.s32.totalorder %s31, 2
      %p54 = por %p52, %p53
      %p56 = scmp.ne.s32.totalorder %s39, %s55
      %p57 = scmp.eq.s32.totalorder %s31, 0
      %p58 = por %p56, %p57
      %s59 = sld [smem:[#allocation3 + %s25]]
      %s60 = sld [smem:[#allocation3 + %s32]]
      %s61 = ssub.s32 %s59, %s60
      %p62 = scmp.eq.s32.totalorder %s61, 0
      %s64 = sadd.s32 %s63, 1
      %s65 = scalar_select %p62, %s63, %s64
      %p68 = pneg %p62
      %p69 = scmp.eq.s32.totalorder %s25, 2
      %p70 = por %p68, %p69
      %p71 = scmp.ne.s32.totalorder %s63, %s66
      %p72 = scmp.eq.s32.totalorder %s25, 0
      %p73 = por %p71, %p72
      %p74 = scmp.ne.s32.totalorder %s63, %s66
      %p75 = scmp.eq.s32.totalorder %s30, 2
      %p76 = por %p74, %p75
      %p77 = scmp.ne.s32.totalorder %s66, %s67
      %p78 = scmp.eq.s32.totalorder %s30, 0
      %p79 = por %p77, %p78
      %p80 = scmp.ne.s32.totalorder %s66, %s67
      %p81 = scmp.eq.s32.totalorder %s31, 2
      %p82 = por %p80, %p81
      %p84 = scmp.ne.s32.totalorder %s67, %s83
      %p85 = scmp.eq.s32.totalorder %s31, 0
      %p86 = por %p84, %p85
      %s87 = sld [smem:[#allocation3 + %s25]]
      %s88 = sld [smem:[#allocation3 + %s32]]
      %s89 = ssub.s32 %s87, %s88
      %p90 = scmp.eq.s32.totalorder %s89, 0
      %s92 = sadd.s32 %s91, 1
      %s93 = scalar_select %p90, %s91, %s92
      %p96 = pneg %p90
      %p97 = scmp.eq.s32.totalorder %s25, 2
      %p98 = por %p96, %p97
      %p99 = scmp.ne.s32.totalorder %s91, %s94
      %p100 = scmp.eq.s32.totalorder %s25, 0
      %p101 = por %p99, %p100
      %p102 = scmp.ne.s32.totalorder %s91, %s94
      %p103 = scmp.eq.s32.totalorder %s30, 2
      %p104 = por %p102, %p103
      %p105 = scmp.ne.s32.totalorder %s94, %s95
      %p106 = scmp.eq.s32.totalorder %s30, 0
      %p107 = por %p105, %p106
      %p108 = scmp.ne.s32.totalorder %s94, %s95
      %p109 = scmp.eq.s32.totalorder %s31, 2
      %p110 = por %p108, %p109
      %p112 = scmp.ne.s32.totalorder %s95, %s111
      %p113 = scmp.eq.s32.totalorder %s31, 0
      %p114 = por %p112, %p113
      %s115 = sld [smem:[#allocation3 + %s25]]
      %s116 = sld [smem:[#allocation3 + %s32]]
      %s117 = ssub.s32 %s115, %s116
      %p118 = scmp.eq.s32.totalorder %s117, 0
      %s120 = sadd.s32 %s119, 1
      %s121 = scalar_select %p118, %s119, %s120
      %p124 = pneg %p118
      %p125 = scmp.eq.s32.totalorder %s25, 2
      %p126 = por %p124, %p125
      %p127 = scmp.ne.s32.totalorder %s119, %s122
      %p128 = scmp.eq.s32.totalorder %s25, 0
      %p129 = por %p127, %p128
      %p130 = scmp.ne.s32.totalorder %s119, %s122
      %p131 = scmp.eq.s32.totalorder %s30, 2
      %p132 = por %p130, %p131
      %p133 = scmp.ne.s32.totalorder %s122, %s123
      %p134 = scmp.eq.s32.totalorder %s30, 0
      %p135 = por %p133, %p134
      %p136 = scmp.ne.s32.totalorder %s122, %s123
      %p137 = scmp.eq.s32.totalorder %s31, 2
      %p138 = por %p136, %p137
      %p140 = scmp.ne.s32.totalorder %s123, %s139
      %p141 = scmp.eq.s32.totalorder %s31, 0
      %p142 = por %p140, %p141
      %s143 = sld [smem:[#allocation3 + %s25]]
      %s144 = sld [smem:[#allocation3 + %s32]]
      %s145 = ssub.s32 %s143, %s144
      %p146 = scmp.eq.s32.totalorder %s145, 0
      %s148 = sadd.s32 %s147, 1
      %s149 = scalar_select %p146, %s147, %s148
      %p152 = pneg %p146
      %p153 = scmp.eq.s32.totalorder %s25, 2
      %p154 = por %p152, %p153
      %p155 = scmp.ne.s32.totalorder %s147, %s150
      %p156 = scmp.eq.s32.totalorder %s25, 0
      %p157 = por %p155, %p156
      %p158 = scmp.ne.s32.totalorder %s147, %s150
      %p159 = scmp.eq.s32.totalorder %s30, 2
      %p160 = por %p158, %p159
      %p161 = scmp.ne.s32.totalorder %s150, %s151
      %p162 = scmp.eq.s32.totalorder %s30, 0
      %p163 = por %p161, %p162
      %p164 = scmp.ne.s32.totalorder %s150, %s151
      %p165 = scmp.eq.s32.totalorder %s31, 2
      %p166 = por %p164, %p165
      %p168 = scmp.ne.s32.totalorder %s151, %s167
      %p169 = scmp.eq.s32.totalorder %s31, 0
      %p170 = por %p168, %p169
      %s171 = ssub.s32 %s25, %s32
      %p172 = scmp.eq.s32.totalorder %s171, 0
      %s174 = sadd.s32 %s173, 1
      %s175 = scalar_select %p172, %s173, %s174
      %p178 = pneg %p172
      %p179 = scmp.eq.s32.totalorder %s25, 2
      %p180 = por %p178, %p179
      %p181 = scmp.ne.s32.totalorder %s173, %s176
      %p182 = scmp.eq.s32.totalorder %s25, 0
      %p183 = por %p181, %p182
      %p184 = scmp.ne.s32.totalorder %s173, %s176
      %p185 = scmp.eq.s32.totalorder %s30, 2
      %p186 = por %p184, %p185
      %p187 = scmp.ne.s32.totalorder %s176, %s177
      %p188 = scmp.eq.s32.totalorder %s30, 0
      %p189 = por %p187, %p188
      %p190 = scmp.ne.s32.totalorder %s176, %s177
      %p191 = scmp.eq.s32.totalorder %s31, 2
      %p192 = por %p190, %p191
      %p194 = scmp.ne.s32.totalorder %s177, %s193
      %p195 = scmp.eq.s32.totalorder %s31, 0
      %p196 = por %p194, %p195
      %p197 = scmp.le.s32.totalorder 1, %s25
      %p198 = scmp.lt.s32.totalorder %s25, 4
      %p199 = pnand %p197, %p198
      %p200 = pneg %p199
      // Predicated region
      $region9: #{tpu_custom_call.1} parent=5 // pred_check
        _
      $region10: #{tpu_custom_call.1} parent=5 // pred_check_branch
        %202 = sbr.rel (%p199) target = $region12
      $region11: #{tpu_custom_call.1} parent=5 // pred_region
        %s203 = ssub.s32 %s25, 1
      $region12: #{tpu_custom_call.1} parent=5 // pred_fallthru
        _
      %p204 = scmp.lt.s32.totalorder %s25, 3
      // Predicated region
      $region13: #{tpu_custom_call.1} parent=5 // pred_check
        %p205 = pneg %p204
      $region14: #{tpu_custom_call.1} parent=5 // pred_check_branch
        %207 = sbr.rel (%p205) target = $region16
      $region15: #{tpu_custom_call.1} parent=5 // pred_region
        // Predicated region
        $region17: #{tpu_custom_call.1} parent=15 // pred_check
          %p208 = pneg %p45
        $region18: #{tpu_custom_call.1} parent=15 // pred_check_branch
          %210 = sbr.rel (%p208) target = $region20
        $region19: #{tpu_custom_call.1} parent=15 // pred_region
          %s211 = sand.u32 %s35, 1
          %s212 = scalar_lea.sflag [#allocation5], %s211
          %s213 = sand.u32 %s35, 1
          %s214 = smul.addr %s213, 16
          %s215 = scalar_lea.vmem [#allocation4], %s214
          %s216 = smul.u32 2, %s25
          %s218 = ssub.s32 256, 256
          %219 = vsyncadd %s212, %s218
          %s220 = smul.addr %s216, 128
          %s221 = scalar_lea.hbm %s1, %s220
          %s222 = sshll.u32 %s215, 4
          %s223 = int_to_ptr.vmem [resolvable:$true] %s222
          %228 = dma.hbm_to_vmem [thread:$0]  %s221, 256, %s223, %s212, 128, 128, 8
        $region20: #{tpu_custom_call.1} parent=15 // pred_fallthru
          _
        // Predicated region
        $region21: #{tpu_custom_call.1} parent=15 // pred_check
          %p229 = pneg %p73
        $region22: #{tpu_custom_call.1} parent=15 // pred_check_branch
          %231 = sbr.rel (%p229) target = $region24
        $region23: #{tpu_custom_call.1} parent=15 // pred_region
          %s232 = sand.u32 %s25, 1
          %s233 = scalar_lea.sflag [#allocation8], %s232
          %s234 = sand.u32 %s63, 1
          %s235 = smul.addr %s234, 128
          %s236 = scalar_lea.vmem [#allocation7], %s235
          %s237 = sld [smem:[#allocation3 + %s25]]
          %s239 = ssub.s32 2048, 2048
          %240 = vsyncadd %s233, %s239
          %s241 = smul.addr %s237, 16
          %s242 = smul.addr %s241, 128
          %s243 = scalar_lea.hbm %s2, %s242
          %s244 = sshll.u32 %s236, 4
          %s245 = int_to_ptr.vmem [resolvable:$true] %s244
          %250 = dma.hbm_to_vmem [thread:$0]  %s243, 2048, %s245, %s233, 128, 128, 8
        $region24: #{tpu_custom_call.1} parent=15 // pred_fallthru
          _
        // Predicated region
        $region25: #{tpu_custom_call.1} parent=15 // pred_check
          %p251 = pneg %p101
        $region26: #{tpu_custom_call.1} parent=15 // pred_check_branch
          %253 = sbr.rel (%p251) target = $region28
        $region27: #{tpu_custom_call.1} parent=15 // pred_region
          %s254 = sld [smem:[#allocation3 + %s25]]
          %p255 = scmp.lt.s32.totalorder %s254, 2
          %s256 = scalar_select %p255, %s254, 2
          %s257 = scalar_lea.vmem %s3, %s256
          %s258 = sld [smem:[#allocation3 + %s25]]
        $region28: #{tpu_custom_call.1} parent=15 // pred_fallthru
          _
        // Predicated region
        $region29: #{tpu_custom_call.1} parent=15 // pred_check
          %p259 = pneg %p129
        $region30: #{tpu_custom_call.1} parent=15 // pred_check_branch
          %261 = sbr.rel (%p259) target = $region32
        $region31: #{tpu_custom_call.1} parent=15 // pred_region
          %s262 = sand.u32 %s25, 1
          %s263 = scalar_lea.sflag [#allocation8], %s262
          %s264 = sand.u32 %s119, 1
          %s265 = smul.addr %s264, 128
          %s266 = scalar_lea.vmem [#allocation9], %s265
          %s267 = sld [smem:[#allocation3 + %s25]]
          %s269 = ssub.s32 2048, 2048
          %270 = vsyncadd %s263, %s269
          %s271 = smul.addr %s267, 16
          %s272 = smul.addr %s271, 128
          %s273 = scalar_lea.hbm %s4, %s272
          %s274 = sshll.u32 %s266, 4
          %s275 = int_to_ptr.vmem [resolvable:$true] %s274
          %280 = dma.hbm_to_vmem [thread:$0]  %s273, 2048, %s275, %s263, 128, 128, 8
        $region32: #{tpu_custom_call.1} parent=15 // pred_fallthru
          _
        // Predicated region
        $region33: #{tpu_custom_call.1} parent=15 // pred_check
          %p281 = pneg %p157
        $region34: #{tpu_custom_call.1} parent=15 // pred_check_branch
          %283 = sbr.rel (%p281) target = $region36
        $region35: #{tpu_custom_call.1} parent=15 // pred_region
          %s284 = sld [smem:[#allocation3 + %s25]]
          %p285 = scmp.lt.s32.totalorder %s284, 2
          %s286 = scalar_select %p285, %s284, 2
          %s287 = scalar_lea.vmem %s5, %s286
          %s288 = sld [smem:[#allocation3 + %s25]]
        $region36: #{tpu_custom_call.1} parent=15 // pred_fallthru
          _
      $region16: #{tpu_custom_call.1} parent=5 // pred_fallthru
        _
      %p289 = scmp.le.s32.totalorder 1, %s25
      %p290 = scmp.lt.s32.totalorder %s25, 4
      %p291 = pnand %p289, %p290
      %p292 = pneg %p291
      // Predicated region
      $region37: #{tpu_custom_call.1} parent=5 // pred_check
        _
      $region38: #{tpu_custom_call.1} parent=5 // pred_check_branch
        %294 = sbr.rel (%p291) target = $region40
      $region39: #{tpu_custom_call.1} parent=5 // pred_region
        %s295 = ssub.s32 %s25, 1
        %s296 = sand.u32 %s38, 1
        %s297 = scalar_lea.sflag [#allocation5], %s296
        %s298 = sand.u32 %s38, 1
        %s299 = smul.addr %s298, 16
        %s300 = scalar_lea.vmem [#allocation4], %s299
        // Predicated region
        $region41: #{tpu_custom_call.1} parent=39 // pred_check
          %p301 = pneg %p51
        $region42: #{tpu_custom_call.1} parent=39 // pred_check_branch
          %303 = sbr.rel (%p301) target = $region44
        $region43: #{tpu_custom_call.1} parent=39 // pred_region
          %304 = dma.done %s297, 256
        $region44: #{tpu_custom_call.1} parent=39 // pred_fallthru
          _
        %s305 = sand.u32 %s30, 1
        %s306 = scalar_lea.sflag [#allocation8], %s305
        %s307 = sand.u32 %s66, 1
        %s308 = smul.addr %s307, 128
        %s309 = scalar_lea.vmem [#allocation7], %s308
        // Predicated region
        $region45: #{tpu_custom_call.1} parent=39 // pred_check
          %p310 = pneg %p79
        $region46: #{tpu_custom_call.1} parent=39 // pred_check_branch
          %312 = sbr.rel (%p310) target = $region48
        $region47: #{tpu_custom_call.1} parent=39 // pred_region
          %313 = dma.done %s306, 2048
        $region48: #{tpu_custom_call.1} parent=39 // pred_fallthru
          _
        %s314 = sand.u32 %s30, 1
        %s315 = scalar_lea.sflag [#allocation8], %s314
        %s316 = sand.u32 %s122, 1
        %s317 = smul.addr %s316, 128
        %s318 = scalar_lea.vmem [#allocation9], %s317
        // Predicated region
        $region49: #{tpu_custom_call.1} parent=39 // pred_check
          %p319 = pneg %p135
        $region50: #{tpu_custom_call.1} parent=39 // pred_check_branch
          %321 = sbr.rel (%p319) target = $region52
        $region51: #{tpu_custom_call.1} parent=39 // pred_region
          %322 = dma.done %s315, 2048
        $region52: #{tpu_custom_call.1} parent=39 // pred_fallthru
          _
        %s323 = sand.u32 %s38, 1
        %s324 = scalar_lea.sflag [#allocation5], %s323
        %s325 = sand.u32 %s38, 1
        %s326 = smul.addr %s325, 16
        %s327 = scalar_lea.vmem [#allocation4], %s326
        %p328 = pneg %p51
        %p329 = pneg %p48
        %s330 = sand.u32 %s30, 1
        %s331 = scalar_lea.sflag [#allocation8], %s330
        %s332 = sand.u32 %s66, 1
        %s333 = smul.addr %s332, 128
        %s334 = scalar_lea.vmem [#allocation7], %s333
        %p335 = pneg %p79
        %p336 = pneg %p76
        %s337 = sld [smem:[#allocation3 + %s30]]
        %p338 = scmp.lt.s32.totalorder %s337, 2
        %s339 = scalar_select %p338, %s337, 2
        %s340 = scalar_lea.vmem %s3, %s339
        %p341 = pneg %p107
        %p342 = pneg %p104
        %s343 = sand.u32 %s30, 1
        %s344 = scalar_lea.sflag [#allocation8], %s343
        %s345 = sand.u32 %s122, 1
        %s346 = smul.addr %s345, 128
        %s347 = scalar_lea.vmem [#allocation9], %s346
        %p348 = pneg %p135
        %p349 = pneg %p132
        %s350 = sld [smem:[#allocation3 + %s30]]
        %p351 = scmp.lt.s32.totalorder %s350, 2
        %s352 = scalar_select %p351, %s350, 2
        %s353 = scalar_lea.vmem %s5, %s352
        %p354 = pneg %p163
        %p355 = pneg %p160
        %p356 = pneg %p189
        %p357 = pneg %p186
        %s358 = sand.u32 %s176, 1
        %s359 = scalar_lea.sflag [#allocation6], %s358
        %s360 = sand.u32 %s176, 1
        %s361 = smul.addr %s360, 16
        %s362 = scalar_lea.vmem [#allocation10], %s361
        %s363 = smul.u32 2, %s30
        %s364 = sld [smem:[#allocation3 + %s30]]
        %s365 = sld [smem:[#allocation3 + %s30]]
        %p366 = scmp.lt.s32.totalorder %s365, 2
        %s367 = scalar_select %p366, %s365, 2
        %s368 = scalar_lea.vmem %s3, %s367
        %s369 = sld [smem:[#allocation3 + %s30]]
        %s370 = sld [smem:[#allocation3 + %s30]]
        %s371 = sld [smem:[#allocation3 + %s30]]
        %p372 = scmp.lt.s32.totalorder %s371, 2
        %s373 = scalar_select %p372, %s371, 2
        %s374 = scalar_lea.vmem %s5, %s373
        %s375 = sld [smem:[#allocation3 + %s30]]
        %s376 = smul.u32 2, %s30
        %v377 = vld [vmem:[%s300] sm:$0xff]
        %v378 = vld [vmem:[%s300 + $0x8] sm:$0xff]
        %v379 = vld [vmem:[%s309] sm:$0xff]
        %v380 = vld [vmem:[%s309 + $0x8] sm:$0xff]
        %v381 = vld [vmem:[%s309 + $0x10] sm:$0xff]
        %v382 = vld [vmem:[%s309 + $0x18] sm:$0xff]
        %v383 = vld [vmem:[%s309 + $0x20] sm:$0xff]
        %v384 = vld [vmem:[%s309 + $0x28] sm:$0xff]
        %v385 = vld [vmem:[%s309 + $0x30] sm:$0xff]
        %v386 = vld [vmem:[%s309 + $0x38] sm:$0xff]
        %v387 = vld [vmem:[%s309 + $0x40] sm:$0xff]
        %v388 = vld [vmem:[%s309 + $0x48] sm:$0xff]
        %v389 = vld [vmem:[%s309 + $0x50] sm:$0xff]
        %v390 = vld [vmem:[%s309 + $0x58] sm:$0xff]
        %v391 = vld [vmem:[%s309 + $0x60] sm:$0xff]
        %v392 = vld [vmem:[%s309 + $0x68] sm:$0xff]
        %v393 = vld [vmem:[%s309 + $0x70] sm:$0xff]
        %v394 = vld [vmem:[%s309 + $0x78] sm:$0xff]
        %v395 = vld [vmem:[%s318] sm:$0xff]
        %v396 = vld [vmem:[%s318 + $0x8] sm:$0xff]
        %v397 = vld [vmem:[%s318 + $0x10] sm:$0xff]
        %v398 = vld [vmem:[%s318 + $0x18] sm:$0xff]
        %v399 = vld [vmem:[%s318 + $0x20] sm:$0xff]
        %v400 = vld [vmem:[%s318 + $0x28] sm:$0xff]
        %v401 = vld [vmem:[%s318 + $0x30] sm:$0xff]
        %v402 = vld [vmem:[%s318 + $0x38] sm:$0xff]
        %v403 = vld [vmem:[%s318 + $0x40] sm:$0xff]
        %v404 = vld [vmem:[%s318 + $0x48] sm:$0xff]
        %v405 = vld [vmem:[%s318 + $0x50] sm:$0xff]
        %v406 = vld [vmem:[%s318 + $0x58] sm:$0xff]
        %v407 = vld [vmem:[%s318 + $0x60] sm:$0xff]
        %v408 = vld [vmem:[%s318 + $0x68] sm:$0xff]
        %v409 = vld [vmem:[%s318 + $0x70] sm:$0xff]
        %v410 = vld [vmem:[%s318 + $0x78] sm:$0xff]
        %v411 = vld [vmem:[%s368] sm:$0x1]
        %v412 = vld [vmem:[%s374] sm:$0x1]
        %v414 = vlaneseq
        %v415 = vshrl.u32 %v414, 7
        %v416 = vsub.s32 0, %v415
        %v417 = vrot.slane %v411, %v416
        %419 = vmatprep.subr.mxu0 0.0
        %420 = vmatpush1.msra.mxu0 %v394
        %421 = vmatprep.subr.mxu0 0.0
        %422 = vmatpush1.msra.mxu0 %v393
        %423 = vmatprep.subr.mxu0 0.0
        %424 = vmatpush1.msra.mxu0 %v392
        %425 = vmatprep.subr.mxu0 0.0
        %426 = vmatpush1.msra.mxu0 %v391
        %427 = vmatprep.subr.mxu0 0.0
        %428 = vmatpush1.msra.mxu0 %v390
        %429 = vmatprep.subr.mxu0 0.0
        %430 = vmatpush1.msra.mxu0 %v389
        %431 = vmatprep.subr.mxu0 0.0
        %432 = vmatpush1.msra.mxu0 %v388
        %433 = vmatprep.subr.mxu0 0.0
        %434 = vmatpush1.msra.mxu0 %v387
        %435 = vmatprep.subr.mxu0 0.0
        %436 = vmatpush1.msra.mxu0 %v386
        %437 = vmatprep.subr.mxu0 0.0
        %438 = vmatpush1.msra.mxu0 %v385
        %439 = vmatprep.subr.mxu0 0.0
        %440 = vmatpush1.msra.mxu0 %v384
        %441 = vmatprep.subr.mxu0 0.0
        %442 = vmatpush1.msra.mxu0 %v383
        %443 = vmatprep.subr.mxu0 0.0
        %444 = vmatpush1.msra.mxu0 %v382
        %445 = vmatprep.subr.mxu0 0.0
        %446 = vmatpush1.msra.mxu0 %v381
        %447 = vmatprep.subr.mxu0 0.0
        %448 = vmatpush1.msra.mxu0 %v380
        %449 = vmatprep.subr.mxu0 0.0
        %450 = vmatpush1.msra.mxu0 %v379
        %451 = vmatprep.subr.mxu0 0.0
        %452 = vmatpush2.msra.mxu0 0.0
        %453 = vmatprep.subr.mxu0 0.0
        %454 = vmatpush2.msra.mxu0 0.0
        %455 = vmatprep.subr.mxu0 0.0
        %456 = vmatpush2.msra.mxu0 0.0
        %457 = vmatprep.subr.mxu0 0.0
        %458 = vmatpush2.msra.mxu0 0.0
        %459 = vmatprep.subr.mxu0 0.0
        %460 = vmatpush2.msra.mxu0 0.0
        %461 = vmatprep.subr.mxu0 0.0
        %462 = vmatpush2.msra.mxu0 0.0
        %463 = vmatprep.subr.mxu0 0.0
        %464 = vmatpush2.msra.mxu0 0.0
        %465 = vmatprep.subr.mxu0 0.0
        %466 = vmatpush2.msra.mxu0 0.0
        %467 = vmatprep.subr.mxu0 0.0
        %468 = vmatpush2.msra.mxu0 0.0
        %469 = vmatprep.subr.mxu0 0.0
        %470 = vmatpush2.msra.mxu0 0.0
        %471 = vmatprep.subr.mxu0 0.0
        %472 = vmatpush2.msra.mxu0 0.0
        %473 = vmatprep.subr.mxu0 0.0
        %474 = vmatpush2.msra.mxu0 0.0
        %475 = vmatprep.subr.mxu0 0.0
        %476 = vmatpush2.msra.mxu0 0.0
        %477 = vmatprep.subr.mxu0 0.0
        %478 = vmatpush2.msra.mxu0 0.0
        %479 = vmatprep.subr.mxu0 0.0
        %480 = vmatpush2.msra.mxu0 0.0
        %481 = vmatprep.subr.mxu0 0.0
        %482 = vmatpush2.msra.mxu0 0.0
        %483 = vmatprep.mubr.f32.mxu0 0.0
        %484 = vmatmul.mubr.f32.gmra.mxu0 %v377
        %v485 = vpop.f32.mrf.mxu0
        %v486 = vadd.f32 %v417, %v485
        %v487 = vpop.f32.mrf.mxu0
        %488 = vmatprep.mubr.f32.mxu0 0.0
        %489 = vmatmul.mubr.f32.gmra.mxu0 %v378
        %v490 = vpop.f32.mrf.mxu0
        %v491 = vadd.f32 %v417, %v490
        %v492 = vpop.f32.mrf.mxu0
        %493 = vdwg.mxu0
        %v494 = vmax.f32 %v486, 0.0
        %v495 = vmax.f32 %v491, 0.0
        %v497 = vlaneseq
        %v498 = vshrl.u32 %v497, 7
        %v499 = vsub.s32 0, %v498
        %v500 = vrot.slane %v412, %v499
        %502 = vmatprep.subr.mxu0 0.0
        %503 = vmatpush1.msra.mxu0 %v410
        %504 = vmatprep.subr.mxu0 0.0
        %505 = vmatpush1.msra.mxu0 %v409
        %506 = vmatprep.subr.mxu0 0.0
        %507 = vmatpush1.msra.mxu0 %v408
        %508 = vmatprep.subr.mxu0 0.0
        %509 = vmatpush1.msra.mxu0 %v407
        %510 = vmatprep.subr.mxu0 0.0
        %511 = vmatpush1.msra.mxu0 %v406
        %512 = vmatprep.subr.mxu0 0.0
        %513 = vmatpush1.msra.mxu0 %v405
        %514 = vmatprep.subr.mxu0 0.0
        %515 = vmatpush1.msra.mxu0 %v404
        %516 = vmatprep.subr.mxu0 0.0
        %517 = vmatpush1.msra.mxu0 %v403
        %518 = vmatprep.subr.mxu0 0.0
        %519 = vmatpush1.msra.mxu0 %v402
        %520 = vmatprep.subr.mxu0 0.0
        %521 = vmatpush1.msra.mxu0 %v401
        %522 = vmatprep.subr.mxu0 0.0
        %523 = vmatpush1.msra.mxu0 %v400
        %524 = vmatprep.subr.mxu0 0.0
        %525 = vmatpush1.msra.mxu0 %v399
        %526 = vmatprep.subr.mxu0 0.0
        %527 = vmatpush1.msra.mxu0 %v398
        %528 = vmatprep.subr.mxu0 0.0
        %529 = vmatpush1.msra.mxu0 %v397
        %530 = vmatprep.subr.mxu0 0.0
        %531 = vmatpush1.msra.mxu0 %v396
        %532 = vmatprep.subr.mxu0 0.0
        %533 = vmatpush1.msra.mxu0 %v395
        %534 = vmatprep.subr.mxu0 0.0
        %535 = vmatpush2.msra.mxu0 0.0
        %536 = vmatprep.subr.mxu0 0.0
        %537 = vmatpush2.msra.mxu0 0.0
        %538 = vmatprep.subr.mxu0 0.0
        %539 = vmatpush2.msra.mxu0 0.0
        %540 = vmatprep.subr.mxu0 0.0
        %541 = vmatpush2.msra.mxu0 0.0
        %542 = vmatprep.subr.mxu0 0.0
        %543 = vmatpush2.msra.mxu0 0.0
        %544 = vmatprep.subr.mxu0 0.0
        %545 = vmatpush2.msra.mxu0 0.0
        %546 = vmatprep.subr.mxu0 0.0
        %547 = vmatpush2.msra.mxu0 0.0
        %548 = vmatprep.subr.mxu0 0.0
        %549 = vmatpush2.msra.mxu0 0.0
        %550 = vmatprep.subr.mxu0 0.0
        %551 = vmatpush2.msra.mxu0 0.0
        %552 = vmatprep.subr.mxu0 0.0
        %553 = vmatpush2.msra.mxu0 0.0
        %554 = vmatprep.subr.mxu0 0.0
        %555 = vmatpush2.msra.mxu0 0.0
        %556 = vmatprep.subr.mxu0 0.0
        %557 = vmatpush2.msra.mxu0 0.0
        %558 = vmatprep.subr.mxu0 0.0
        %559 = vmatpush2.msra.mxu0 0.0
        %560 = vmatprep.subr.mxu0 0.0
        %561 = vmatpush2.msra.mxu0 0.0
        %562 = vmatprep.subr.mxu0 0.0
        %563 = vmatpush2.msra.mxu0 0.0
        %564 = vmatprep.subr.mxu0 0.0
        %565 = vmatpush2.msra.mxu0 0.0
        %566 = vmatprep.mubr.f32.mxu0 0.0
        %567 = vmatmul.mubr.f32.gmra.mxu0 %v494
        %v568 = vpop.f32.mrf.mxu0
        %v569 = vadd.f32 %v500, %v568
        %v570 = vpop.f32.mrf.mxu0
        %571 = vmatprep.mubr.f32.mxu0 0.0
        %572 = vmatmul.mubr.f32.gmra.mxu0 %v495
        %v573 = vpop.f32.mrf.mxu0
        %v574 = vadd.f32 %v500, %v573
        %v575 = vpop.f32.mrf.mxu0
        %576 = vdwg.mxu0
        %v577 = vmul.f32 %v569, %v569
        %v578 = vmul.f32 %v574, %v574
        %579 = vadd.xlane.f32.xlu0 %v577
        %v580 = vpop.xlane.xlu0 %579
        %581 = vadd.xlane.f32.xlu0 %v578
        %v582 = vpop.xlane.xlu0 %581
        %v583 = vrsqrt.pop %v580
        %v584 = vmul.f32 %v580, %v583
        %vm585 = vcmp.eq.f32.partialorder %v580, inf
        %v586 = vsel %vm585, %v580, %v584
        %vm587 = vcmp.eq.f32.partialorder %v580, 0.0
        %v588 = vand.u32 %v580, 2147483648
        %v589 = vsel %vm587, %v588, %v586
        %v590 = vrsqrt.pop %v582
        %v591 = vmul.f32 %v582, %v590
        %vm592 = vcmp.eq.f32.partialorder %v582, inf
        %v593 = vsel %vm592, %v582, %v591
        %vm594 = vcmp.eq.f32.partialorder %v582, 0.0
        %v595 = vand.u32 %v582, 2147483648
        %v596 = vsel %vm594, %v595, %v593
        %v597 = vadd.f32 %v589, 1e-07
        %v598 = vadd.f32 %v596, 1e-07
        %v599 = vrcp.pop %v597
        %v600 = vrcp.pop %v598
        %v601 = vmul.f32 %v597, %v599
        %v602 = vmul.f32 %v598, %v600
        %v603 = vsub.f32 2.0, %v601
        %v604 = vsub.f32 2.0, %v602
        %v605 = vmul.f32 %v599, %v603
        %v606 = vmul.f32 %v600, %v604
        %v607 = vmul.f32 %v569, %v605
        %v608 = vmul.f32 %v574, %v606
        %609 = vst [vmem:[%s362] sm:$0xff] %v607
        %610 = vst [vmem:[%s362 + $0x8] sm:$0xff] %v608
        %s611 = sand.u32 %s176, 1
        %s612 = scalar_lea.sflag [#allocation6], %s611
        %s613 = sand.u32 %s176, 1
        %s614 = smul.addr %s613, 16
        %s615 = scalar_lea.vmem [#allocation10], %s614
        // Predicated region
        $region53: #{tpu_custom_call.1} parent=39 // pred_check
          %p616 = pneg %p186
        $region54: #{tpu_custom_call.1} parent=39 // pred_check_branch
          %618 = sbr.rel (%p616) target = $region56
        $region55: #{tpu_custom_call.1} parent=39 // pred_region
          %s619 = smul.u32 2, %s30
          %s621 = ssub.s32 256, 256
          %622 = vsyncadd %s612, %s621
          %s623 = smul.addr %s619, 128
          %s624 = scalar_lea.hbm %s6, %s623
          %s625 = sshll.u32 %s615, 4
          %s626 = int_to_ptr.vmem [resolvable:$true] %s625
          %631 = dma.vmem_to_hbm [thread:$0]  %s626, 256, %s624, %s612, 128, 128, 8
        $region56: #{tpu_custom_call.1} parent=39 // pred_fallthru
          _
      $region40: #{tpu_custom_call.1} parent=5 // pred_fallthru
        _
      %p632 = scmp.le.s32.totalorder 2, %s25
      // Predicated region
      $region57: #{tpu_custom_call.1} parent=5 // pred_check
        %p633 = pneg %p632
      $region58: #{tpu_custom_call.1} parent=5 // pred_check_branch
        %635 = sbr.rel (%p633) target = $region60
      $region59: #{tpu_custom_call.1} parent=5 // pred_region
        %s636 = ssub.s32 %s25, 2
        // Predicated region
        $region61: #{tpu_custom_call.1} parent=59 // pred_check
          %p637 = pneg %p192
        $region62: #{tpu_custom_call.1} parent=59 // pred_check_branch
          %639 = sbr.rel (%p637) target = $region64
        $region63: #{tpu_custom_call.1} parent=59 // pred_region
          %s640 = sand.u32 %s177, 1
          %s641 = scalar_lea.sflag [#allocation6], %s640
          %s642 = sand.u32 %s177, 1
          %s643 = smul.addr %s642, 16
          %s644 = scalar_lea.vmem [#allocation10], %s643
          %645 = dma.done %s641, 256
        $region64: #{tpu_custom_call.1} parent=59 // pred_fallthru
          _
      $region60: #{tpu_custom_call.1} parent=5 // pred_fallthru
        _
    $region6: #{tpu_custom_call.1} parent=1 // loop_footer
      %s29 = sadd.s32 1, %s25
    $region7: #{tpu_custom_call.1} parent=1 // loop_footer_branch
      %24 = sbr.rel target = $region3
    $region8: #{tpu_custom_call.1} parent=1 // loop_exit
      _
    %646 = vsyncpa [#allocation5], 1
    %s647 = scalar_lea.sflag [#allocation5], 1
    %648 = vsyncpa %s647, 1
    %649 = vsyncpa [#allocation8], 1
    %s650 = scalar_lea.sflag [#allocation8], 1
    %651 = vsyncpa %s650, 1
    %652 = vsyncpa [#allocation6], 1
    %s653 = scalar_lea.sflag [#allocation6], 1
    %654 = vsyncpa %s653, 1

</llo_original>
